<compile_context>
chip_gen: v7x
topology: tpu7x:2x2x1
jax: 0.10.0
libtpu: 0.0.40
codegen_flags: <defaults>
</compile_context>

<pallas_src>
import functools

import jax
import jax.numpy as jnp
from jax.experimental import pallas as pl
from jax.experimental.pallas import tpu as pltpu

LANES = 128
SUBLANES = 8
CHUNK_ROWS = 64            # inner-loop chunk: 8 vregs / input -> vreg-resident temps
DEFAULT_ROW_TILE = 8192    # 8192 * 128 * 4B = 4 MiB per input block (f32)
FAST_PATH_ELEMS = 1 << 18  # below this, XLA's fused reduce beats kernel launch cost


def _cdiv(a, b):
    return -(-a // b)


def _device_config():
    """(num_shards, row_tile) for the current chip generation.

    v7x has 2 TensorCores per chip -> shard the grid across them; single-TC
    chips (v5e / v6e) get a degenerate size-1 shard axis (no extra padding,
    no extra accumulator slab)."""
    num_shards = 1
    try:
        kind = jax.devices()[0].device_kind.lower()
        if "7" in kind:          # "TPU7x" / "TPU v7x"
            num_shards = 2
    except Exception:
        pass
    return num_shards, DEFAULT_ROW_TILE


def _piq_sums_f32(x, t):
    """Plain-JAX partial sums (small-input fast path, unaligned inputs, and
    the ragged tail the kernel does not cover).  Returns (sum_sq, sum_l1)."""
    xf = x.astype(jnp.float32)
    tf = t.astype(jnp.float32)
    xc = jnp.clip(xf, 0.0, 1.0)
    tc = jnp.clip(tf, 0.0, 1.0)
    return jnp.sum((xc - tc) ** 2), jnp.sum(jnp.abs(xc - xf))


def _piq_reduce_kernel(x_ref, t_ref, sq_ref, l1_ref, *, n_chunks):
    """Accumulate vreg-shaped (8,128) partials of
         sum((clamp(x)-clamp(t))^2)  and  sum(|clamp(x)-x|)
    into per-shard output accumulators (resident across the reduction axis).

    The VMEM block is walked in CHUNK_ROWS-row chunks so every intermediate
    stays in vector registers (no VMEM round-trips of tile-sized f32
    temporaries); the single cross-lane reduce happens in the wrapper."""
    @pl.when(pl.program_id(1) == 0)
    def _init():
        sq_ref[...] = jnp.zeros_like(sq_ref)
        l1_ref[...] = jnp.zeros_like(l1_ref)

    def body(i, carry):
        sq_acc, l1_acc = carry
        r0 = pl.multiple_of(i * CHUNK_ROWS, CHUNK_ROWS)
        x = x_ref[pl.ds(r0, CHUNK_ROWS), :].astype(jnp.float32)
        t = t_ref[pl.ds(r0, CHUNK_ROWS), :].astype(jnp.float32)
        xc = jnp.clip(x, 0.0, 1.0)
        tc = jnp.clip(t, 0.0, 1.0)
        d = xc - tc
        sq = jnp.sum((d * d).reshape(CHUNK_ROWS // SUBLANES, SUBLANES, LANES), axis=0)
        l1 = jnp.sum(jnp.abs(xc - x).reshape(CHUNK_ROWS // SUBLANES, SUBLANES, LANES),
                     axis=0)
        return sq_acc + sq, l1_acc + l1

    zero = jnp.zeros((SUBLANES, LANES), jnp.float32)
    sq_p, l1_p = jax.lax.fori_loop(0, n_chunks, body, (zero, zero))
    sq_ref[...] += sq_p[None, :, :]
    l1_ref[...] += l1_p[None, :, :]


def _run_reduce(x2, t2, num_shards, tiles_per_shard, tile):
    itemsize = jnp.dtype(x2.dtype).itemsize
    n_main = num_shards * tiles_per_shard * tile * LANES

    # 2 inputs x double-buffer + headroom.  Explicit so 4 MiB blocks work on
    # v5e's 16 MiB scoped default and stay well under v7x's smaller VMEM.
    buf_bytes = 2 * 2 * tile * LANES * itemsize
    vmem_limit = int(min(max(buf_bytes + (4 << 20), 16 << 20), 30 << 20))

    in_map = lambda c, i: (i * num_shards + c, 0)     # round-robin tiles -> shards
    out_map = lambda c, i: (c, 0, 0)

    kernel = functools.partial(_piq_reduce_kernel, n_chunks=tile // CHUNK_ROWS)
    cost = pl.CostEstimate(
        flops=10 * n_main,
        transcendentals=0,
        bytes_accessed=2 * n_main * itemsize + 2 * num_shards * SUBLANES * LANES * 4)

    def build(dim_sems):
        return pl.pallas_call(
            kernel,
            out_shape=(
                jax.ShapeDtypeStruct((num_shards, SUBLANES, LANES), jnp.float32),
                jax.ShapeDtypeStruct((num_shards, SUBLANES, LANES), jnp.float32),
            ),
            grid_spec=pltpu.PrefetchScalarGridSpec(
                num_scalar_prefetch=0,
                grid=(num_shards, tiles_per_shard),
                in_specs=[
                    pl.BlockSpec((tile, LANES), in_map),
                    pl.BlockSpec((tile, LANES), in_map),
                ],
                out_specs=[
                    pl.BlockSpec((1, SUBLANES, LANES), out_map),
                    pl.BlockSpec((1, SUBLANES, LANES), out_map),
                ],
            ),
            compiler_params=pltpu.CompilerParams(
                dimension_semantics=dim_sems,
                vmem_limit_bytes=vmem_limit,
            ),
            cost_estimate=cost,
        )

    if num_shards == 2:
        # CORE_PARALLEL is the only semantics guaranteed to split the leading
        # axis across the two v7x TensorCores; fall back if rejected.
        try:
            return build((pltpu.CORE_PARALLEL, pltpu.ARBITRARY))(x2, t2)
        except Exception:
            return build(("parallel", "arbitrary"))(x2, t2)
    return build(("arbitrary", "arbitrary"))(x2, t2)


def piq_loss(x, target, l1_epsilon=0.01, row_tile=None):
    """PIQLoss(loss=MSE) forward.  x, target: float arrays of the same shape."""
    assert x.shape == target.shape
    n_total = x.size
    assert n_total > 0
    eps = jnp.asarray(l1_epsilon, jnp.float32)
    inv_n = 1.0 / float(n_total)

    num_shards, default_tile = _device_config()
    if row_tile is None:
        row_tile = default_tile
    itemsize = jnp.dtype(x.dtype).itemsize
    if itemsize > 4:                       # keep 2x2 input buffers inside the budget
        row_tile = max(CHUNK_ROWS, row_tile // (itemsize // 4))

    # The kernel path needs a free (rows, 128) view of the data.  Tiny inputs
    # and inputs whose flat size is not a multiple of 128 would require an
    # O(n) pad/slice copy (doubling HBM traffic for a memory-bound op), so
    # those go through XLA's fused elementwise+reduce instead (zero copies).
    if n_total < FAST_PATH_ELEMS or n_total % LANES != 0:
        sq, l1 = _piq_sums_f32(x, target)
        return sq * inv_n + eps * (l1 * inv_n)

    rows = n_total // LANES
    tiles_cap = num_shards * max(1, _cdiv(rows, num_shards * row_tile))
    tile = (min(row_tile, rows // tiles_cap) // CHUNK_ROWS) * CHUNK_ROWS
    if tile < CHUNK_ROWS:                  # defensive; unreachable above threshold
        sq, l1 = _piq_sums_f32(x, target)
        return sq * inv_n + eps * (l1 * inv_n)
    total_tiles = (rows // tile) // num_shards * num_shards
    tiles_per_shard = total_tiles // num_shards
    rows_main = total_tiles * tile

    x2 = x.reshape(rows, LANES)            # exact reshape of contiguous data: no copy
    t2 = target.reshape(rows, LANES)

    sq_part, l1_part = _run_reduce(x2, t2, num_shards, tiles_per_shard, tile)
    sq_sum = jnp.sum(sq_part)
    l1_sum = jnp.sum(l1_part)

    if rows_main < rows:                   # small ragged tail (< total_tiles*64 rows)
        sq_t, l1_t = _piq_sums_f32(x2[rows_main:], t2[rows_main:])
        sq_sum = sq_sum + sq_t
        l1_sum = l1_sum + l1_t

    return sq_sum * inv_n + eps * (l1_sum * inv_n)


def piq_loss_ref(x, target, l1_epsilon=0.01):
    """Plain-JAX reference matching the PyTorch module with loss=MSE."""
    xf = x.astype(jnp.float32)
    tf = target.astype(jnp.float32)
    xc = jnp.clip(xf, 0.0, 1.0)
    tc = jnp.clip(tf, 0.0, 1.0)
    l1 = l1_epsilon * jnp.mean(jnp.abs(xc - xf))
    return jnp.mean((xc - tc) ** 2) + l1


if __name__ == "__main__":
    key = jax.random.PRNGKey(0)
    kx, kt = jax.random.split(key)

    def check(shape, rtol=1e-5, atol=1e-6):
        # Values span beyond [0, 1] so both clamps matter.
        xv = jax.random.normal(kx, shape, dtype=jnp.float32) * 1.5 + 0.5
        tv = jax.random.normal(kt, shape, dtype=jnp.float32) * 1.5 + 0.5
        out = jax.block_until_ready(piq_loss(xv, tv))
        ref = jax.block_until_ready(piq_loss_ref(xv, tv))
        assert jnp.allclose(out, ref, rtol=rtol, atol=atol), (shape, out, ref)

    # Small NCHW inputs (spec-sized): fused-XLA fast path.
    check((2, 4, 16, 16))
    # Non-128-divisible flat size: copy-free XLA path.
    check((3, 3, 17, 19))
    # Pallas kernel path; the grid exactly covers the data.
    check((2, 4, 192, 256))
    # Pallas kernel path with a ragged row tail combined in the wrapper.
    check((2, 3, 200, 256))

    print("KERNEL_OK")
</pallas_src>

<mosaic_0001>
module attributes {stable_mosaic.version = 11 : i64} {
  func.func @_piq_reduce_kernel(%arg0: i32, %arg1: i32, %arg2: memref<3072x128xf32, #tpu.memory_space<vmem>>, %arg3: memref<3072x128xf32, #tpu.memory_space<vmem>>, %arg4: memref<1x8x128xf32, #tpu.memory_space<vmem>>, %arg5: memref<1x8x128xf32, #tpu.memory_space<vmem>>) attributes {dimension_semantics = [#tpu.dimension_semantics<arbitrary>, #tpu.dimension_semantics<arbitrary>], iteration_bounds = array<i64: 1, 1>, scalar_prefetch = 0 : i64, scratch_operands = 0 : i64, tpu.core_type = #tpu.core_type<tc>, window_params = [{transform_indices = @transform_0, window_bounds = array<i64: 3072, 128>}, {transform_indices = @transform_1, window_bounds = array<i64: 3072, 128>}, {transform_indices = @transform_2, window_bounds = array<i64: 1, 8, 128>}, {transform_indices = @transform_3, window_bounds = array<i64: 1, 8, 128>}]} {
    %c0_i32 = arith.constant 0 : i32
    %0 = arith.cmpi eq, %arg1, %c0_i32 : i32
    %1 = arith.extui %0 : i1 to i32
    %c0_i32_0 = arith.constant 0 : i32
    %2 = arith.cmpi ne, %1, %c0_i32_0 : i32
    scf.if %2 {
      %cst_14 = arith.constant 0.000000e+00 : f32
      %14 = vector.broadcast %cst_14 : f32 to vector<1x8x128xf32>
      %c0_15 = arith.constant 0 : index
      %c0_16 = arith.constant 0 : index
      %c0_17 = arith.constant 0 : index
      %15 = vector.load %arg4[%c0_15, %c0_16, %c0_17] : memref<1x8x128xf32, #tpu.memory_space<vmem>>, vector<1x8x128xf32>
      tpu.vector_store %arg4[%c0_15, %c0_16, %c0_17], %14 {strides = array<i32>} : memref<1x8x128xf32, #tpu.memory_space<vmem>>, vector<1x8x128xf32>,
      %cst_18 = arith.constant 0.000000e+00 : f32
      %16 = vector.broadcast %cst_18 : f32 to vector<1x8x128xf32>
      %c0_19 = arith.constant 0 : index
      %c0_20 = arith.constant 0 : index
      %c0_21 = arith.constant 0 : index
      %17 = vector.load %arg5[%c0_19, %c0_20, %c0_21] : memref<1x8x128xf32, #tpu.memory_space<vmem>>, vector<1x8x128xf32>
      tpu.vector_store %arg5[%c0_19, %c0_20, %c0_21], %16 {strides = array<i32>} : memref<1x8x128xf32, #tpu.memory_space<vmem>>, vector<1x8x128xf32>,
    } else {
    }
    %cst = arith.constant 0.000000e+00 : f32
    %3 = vector.broadcast %cst : f32 to vector<8x128xf32>
    %c0_i32_1 = arith.constant 0 : i32
    %c48_i32 = arith.constant 48 : i32
    %4 = arith.addi %c0_i32_1, %c48_i32 : i32
    %c1_i32 = arith.constant 1 : i32
    %5:2 = scf.for %arg6 = %c0_i32_1 to %4 step %c1_i32 iter_args(%arg7 = %3, %arg8 = %3) -> (vector<8x128xf32>, vector<8x128xf32>)  : i32 {
      %c64_i32 = arith.constant 64 : i32
      %14 = arith.muli %arg6, %c64_i32 : i32
      %15 = tpu.assume_multiple %14, 64 : i32
      %16 = arith.index_cast %15 : i32 to index
      %c0_14 = arith.constant 0 : index
      %17 = vector.load %arg2[%16, %c0_14] : memref<3072x128xf32, #tpu.memory_space<vmem>>, vector<64x128xf32>
      %18 = arith.index_cast %15 : i32 to index
      %c0_15 = arith.constant 0 : index
      %19 = vector.load %arg3[%18, %c0_15] : memref<3072x128xf32, #tpu.memory_space<vmem>>, vector<64x128xf32>
      %cst_16 = arith.constant 0.000000e+00 : f32
      %cst_17 = arith.constant 1.000000e+00 : f32
      %20 = vector.broadcast %cst_16 : f32 to vector<64x128xf32>
      %21 = arith.maximumf %20, %17 : vector<64x128xf32>
      %22 = vector.broadcast %cst_17 : f32 to vector<64x128xf32>
      %23 = arith.minimumf %22, %21 : vector<64x128xf32>
      %cst_18 = arith.constant 0.000000e+00 : f32
      %cst_19 = arith.constant 1.000000e+00 : f32
      %24 = vector.broadcast %cst_18 : f32 to vector<64x128xf32>
      %25 = arith.maximumf %24, %19 : vector<64x128xf32>
      %26 = vector.broadcast %cst_19 : f32 to vector<64x128xf32>
      %27 = arith.minimumf %26, %25 : vector<64x128xf32>
      %28 = arith.subf %23, %27 : vector<64x128xf32>
      %29 = arith.mulf %28, %28 : vector<64x128xf32>
      %30 = vector.shape_cast %29 : vector<64x128xf32> to vector<8x8x128xf32>
      %cst_20 = arith.constant dense<0.000000e+00> : vector<8x128xf32>
      %31 = vector.multi_reduction <add>, %30, %cst_20 [0] : vector<8x8x128xf32> to vector<8x128xf32>
      %32 = arith.subf %23, %17 : vector<64x128xf32>
      %33 = math.absf %32 : vector<64x128xf32>
      %34 = vector.shape_cast %33 : vector<64x128xf32> to vector<8x8x128xf32>
      %cst_21 = arith.constant dense<0.000000e+00> : vector<8x128xf32>
      %35 = vector.multi_reduction <add>, %34, %cst_21 [0] : vector<8x8x128xf32> to vector<8x128xf32>
      %36 = arith.addf %arg7, %31 : vector<8x128xf32>
      %37 = arith.addf %arg8, %35 : vector<8x128xf32>
      scf.yield %36, %37 : vector<8x128xf32>, vector<8x128xf32>
    }
    %c48_i32_2 = arith.constant 48 : i32
    %c0 = arith.constant 0 : index
    %c0_3 = arith.constant 0 : index
    %c0_4 = arith.constant 0 : index
    %6 = vector.load %arg4[%c0, %c0_3, %c0_4] : memref<1x8x128xf32, #tpu.memory_space<vmem>>, vector<1x8x128xf32>
    %7 = vector.shape_cast %5#0 : vector<8x128xf32> to vector<1x8x128xf32>
    %8 = arith.addf %6, %7 : vector<1x8x128xf32>
    %c0_5 = arith.constant 0 : index
    %c0_6 = arith.constant 0 : index
    %c0_7 = arith.constant 0 : index
    %9 = vector.load %arg4[%c0_5, %c0_6, %c0_7] : memref<1x8x128xf32, #tpu.memory_space<vmem>>, vector<1x8x128xf32>
    tpu.vector_store %arg4[%c0_5, %c0_6, %c0_7], %8 {strides = array<i32>} : memref<1x8x128xf32, #tpu.memory_space<vmem>>, vector<1x8x128xf32>,
    %c0_8 = arith.constant 0 : index
    %c0_9 = arith.constant 0 : index
    %c0_10 = arith.constant 0 : index
    %10 = vector.load %arg5[%c0_8, %c0_9, %c0_10] : memref<1x8x128xf32, #tpu.memory_space<vmem>>, vector<1x8x128xf32>
    %11 = vector.shape_cast %5#1 : vector<8x128xf32> to vector<1x8x128xf32>
    %12 = arith.addf %10, %11 : vector<1x8x128xf32>
    %c0_11 = arith.constant 0 : index
    %c0_12 = arith.constant 0 : index
    %c0_13 = arith.constant 0 : index
    %13 = vector.load %arg5[%c0_11, %c0_12, %c0_13] : memref<1x8x128xf32, #tpu.memory_space<vmem>>, vector<1x8x128xf32>
    tpu.vector_store %arg5[%c0_11, %c0_12, %c0_13], %12 {strides = array<i32>} : memref<1x8x128xf32, #tpu.memory_space<vmem>>, vector<1x8x128xf32>,
    return
  }
  func.func @transform_0(%arg0: i32, %arg1: i32) -> (i32, i32) {
    %c1_i32 = arith.constant 1 : i32
    %0 = arith.muli %arg1, %c1_i32 : i32
    %1 = arith.addi %0, %arg0 : i32
    %c0_i32 = arith.constant 0 : i32
    %c0_i32_0 = arith.constant 0 : i32
    return %1, %c0_i32 : i32, i32
  }
  func.func @transform_1(%arg0: i32, %arg1: i32) -> (i32, i32) {
    %c1_i32 = arith.constant 1 : i32
    %0 = arith.muli %arg1, %c1_i32 : i32
    %1 = arith.addi %0, %arg0 : i32
    %c0_i32 = arith.constant 0 : i32
    %c0_i32_0 = arith.constant 0 : i32
    return %1, %c0_i32 : i32, i32
  }
  func.func @transform_2(%arg0: i32, %arg1: i32) -> (i32, i32, i32) {
    %c0_i32 = arith.constant 0 : i32
    %c0_i32_0 = arith.constant 0 : i32
    %c0_i32_1 = arith.constant 0 : i32
    return %arg0, %c0_i32, %c0_i32_0 : i32, i32, i32
  }
  func.func @transform_3(%arg0: i32, %arg1: i32) -> (i32, i32, i32) {
    %c0_i32 = arith.constant 0 : i32
    %c0_i32_0 = arith.constant 0 : i32
    %c0_i32_1 = arith.constant 0 : i32
    return %arg0, %c0_i32, %c0_i32_0 : i32, i32, i32
  }
}

</mosaic_0001>

<llo_original>
// kernel: tpu_custom_call.1
$region0: #{tpu_custom_call.1}
  #allocation0 [shape = 'u32[]', space=smem, size = 0x4, offset = 0x4, fixed_abs, tag = 'smem constant byte address 0x4 - core index']
  #allocation1 [shape = 'u32[144,128]{1,0:T(1,128)}', space=vmem, size = 0x12000, scoped, tag = 'internal scratch']
  %s0 = inlined_call_operand.hbm [shape: f32[3072,128], index: 0, kind: input, shape index: {}]
  %s1 = inlined_call_operand.hbm [shape: f32[3072,128], index: 1, kind: input, shape index: {}]
  %s2 = inlined_call_operand.hbm [shape: f32[1,8,128], index: 2, kind: output, shape index: {0}]
  %s3 = inlined_call_operand.hbm [shape: f32[1,8,128], index: 3, kind: output, shape index: {1}]
  %4 = xla_tuple %s2, %s3
  %s5 = sld [smem:[#allocation0]]
  $region45: #{tpu_custom_call.1} parent=0
    _
  %s7 = ssub.s32 1, %s5
  %s8 = scalar_select 0, %s7, %s5
  $region1: #{tpu_custom_call.1} parent=0
    #allocation2 [shape = 'u8[1572864]{0}', space=vmem, size = 0x180000, scoped, tag = 'input window, operand 0, single buffered']
    #allocation3 [shape = 's32[1]{0}', space=sflag, size = 0x4, scoped, tag = 'scoped memory for tpu_custom_call.1']
    #allocation4 [shape = 's32[1]{0}', space=sflag, size = 0x4, scoped, tag = 'scoped memory for tpu_custom_call.1']
    #allocation5 [shape = 'u8[1572864]{0}', space=vmem, size = 0x180000, scoped, tag = 'input window, operand 1, single buffered']
    #allocation6 [shape = 's32[1]{0}', space=sflag, size = 0x4, scoped, tag = 'scoped memory for tpu_custom_call.1']
    #allocation7 [shape = 'u8[4096]{0}', space=vmem, size = 0x1000, scoped, tag = 'output window, operand 0, single buffered']
    #allocation8 [shape = 'u8[4096]{0}', space=vmem, size = 0x1000, scoped, tag = 'output window, operand 1, single buffered']
    #allocation9 [shape = 's32[1]{0}', space=sflag, size = 0x4, scoped, tag = 'scoped memory for tpu_custom_call.1']
    %9 = vsyncpa [#allocation3], 0
    %10 = vsyncpa [#allocation6], 0
    %11 = vsyncpa [#allocation4], 0
    %12 = vsyncpa [#allocation9], 0
    // Predicated region
    $region2: #{tpu_custom_call.1} parent=1 // pred_check
      _
    $region3: #{tpu_custom_call.1} parent=1 // pred_check_branch
      %14 = sbr.rel (0) target = $region5
    $region4: #{tpu_custom_call.1} parent=1 // pred_region
      %s15 = sadd.s32 0, 0
      %s16 = smul.u32 384, %s15
      %s18 = ssub.s32 49152, 49152
      %19 = vsyncadd [#allocation3], %s18
      %s20 = smul.addr %s16, 128
      %s21 = scalar_lea.hbm %s0, %s20
      %s22 = sshll.u32 [#allocation2], 4
      %s23 = int_to_ptr.vmem [resolvable:$true] %s22
      %28 = dma.hbm_to_vmem [thread:$0]  %s21, 49152, %s23, [#allocation3], 128, 128, 8
    $region5: #{tpu_custom_call.1} parent=1 // pred_fallthru
      _
    // Predicated region
    $region6: #{tpu_custom_call.1} parent=1 // pred_check
      _
    $region7: #{tpu_custom_call.1} parent=1 // pred_check_branch
      %30 = sbr.rel (0) target = $region9
    $region8: #{tpu_custom_call.1} parent=1 // pred_region
      %s31 = sadd.s32 0, 0
      %s32 = smul.u32 384, %s31
      %s34 = ssub.s32 49152, 49152
      %35 = vsyncadd [#allocation6], %s34
      %s36 = smul.addr %s32, 128
      %s37 = scalar_lea.hbm %s1, %s36
      %s38 = sshll.u32 [#allocation5], 4
      %s39 = int_to_ptr.vmem [resolvable:$true] %s38
      %44 = dma.hbm_to_vmem [thread:$0]  %s37, 49152, %s39, [#allocation6], 128, 128, 8
    $region9: #{tpu_custom_call.1} parent=1 // pred_fallthru
      _
    // Predicated region
    $region10: #{tpu_custom_call.1} parent=1 // pred_check
      _
    $region11: #{tpu_custom_call.1} parent=1 // pred_check_branch
      %46 = sbr.rel (0) target = $region13
    $region12: #{tpu_custom_call.1} parent=1 // pred_region
      %47 = dma.done [#allocation3], 49152
    $region13: #{tpu_custom_call.1} parent=1 // pred_fallthru
      _
    // Predicated region
    $region14: #{tpu_custom_call.1} parent=1 // pred_check
      _
    $region15: #{tpu_custom_call.1} parent=1 // pred_check_branch
      %49 = sbr.rel (0) target = $region17
    $region16: #{tpu_custom_call.1} parent=1 // pred_region
      %50 = dma.done [#allocation6], 49152
    $region17: #{tpu_custom_call.1} parent=1 // pred_fallthru
      _
    %s51 = sadd.s32 0, 0
    %s52 = smul.u32 384, %s51
    %s53 = sadd.s32 0, 0
    %s54 = smul.u32 384, %s53
    %p55 = scmp.eq.s32.totalorder 0, 0
    // Predicated region
    $region18: #{tpu_custom_call.1} parent=1 // pred_check
      %p56 = pneg %p55
    $region19: #{tpu_custom_call.1} parent=1 // pred_check_branch
      %58 = sbr.rel (%p56) target = $region21
    $region20: #{tpu_custom_call.1} parent=1 // pred_region
      %59 = vst [vmem:[#allocation7] sm:$0xff] 0.0
      %60 = vst [vmem:[#allocation8] sm:$0xff] 0.0
    $region21: #{tpu_custom_call.1} parent=1 // pred_fallthru
      _
    loop: start=0, step=1, limit=48
    $region22: #{tpu_custom_call.1} parent=1 // loop_pre_header
      _
    $region23: #{tpu_custom_call.1} parent=1 // loop_header
      %s62 = sphi 0, %s66
      %p63 = scmp.ge.s32.totalorder %s62, 48
      %v67 = vphi 0.0, %v166
      %v68 = vphi 0.0, %v167
    $region24: #{tpu_custom_call.1} parent=1 // loop_header_branch
      %65 = sbr.rel (%p63) target = $region28
    $region25: #{tpu_custom_call.1} parent=1 // loop_body
      %s69 = smul.u32 %s62, 64
      %s70 = scalar_lea.vmem [#allocation2], %s69
      %v71 = vld [vmem:[%s70] sm:$0xff]
      %v72 = vld [vmem:[%s70 + $0x8] sm:$0xff]
      %v73 = vld [vmem:[%s70 + $0x10] sm:$0xff]
      %v74 = vld [vmem:[%s70 + $0x18] sm:$0xff]
      %v75 = vld [vmem:[%s70 + $0x20] sm:$0xff]
      %v76 = vld [vmem:[%s70 + $0x28] sm:$0xff]
      %v77 = vld [vmem:[%s70 + $0x30] sm:$0xff]
      %v78 = vld [vmem:[%s70 + $0x38] sm:$0xff]
      %s79 = scalar_lea.vmem [#allocation5], %s69
      %v80 = vld [vmem:[%s79] sm:$0xff]
      %v81 = vld [vmem:[%s79 + $0x8] sm:$0xff]
      %v82 = vld [vmem:[%s79 + $0x10] sm:$0xff]
      %v83 = vld [vmem:[%s79 + $0x18] sm:$0xff]
      %v84 = vld [vmem:[%s79 + $0x20] sm:$0xff]
      %v85 = vld [vmem:[%s79 + $0x28] sm:$0xff]
      %v86 = vld [vmem:[%s79 + $0x30] sm:$0xff]
      %v87 = vld [vmem:[%s79 + $0x38] sm:$0xff]
      %v88 = vmax.f32 %v71, 0.0
      %v89 = vmax.f32 %v72, 0.0
      %v90 = vmax.f32 %v73, 0.0
      %v91 = vmax.f32 %v74, 0.0
      %v92 = vmax.f32 %v75, 0.0
      %v93 = vmax.f32 %v76, 0.0
      %v94 = vmax.f32 %v77, 0.0
      %v95 = vmax.f32 %v78, 0.0
      %v96 = vmin.f32 %v88, 1.0
      %v97 = vmin.f32 %v89, 1.0
      %v98 = vmin.f32 %v90, 1.0
      %v99 = vmin.f32 %v91, 1.0
      %v100 = vmin.f32 %v92, 1.0
      %v101 = vmin.f32 %v93, 1.0
      %v102 = vmin.f32 %v94, 1.0
      %v103 = vmin.f32 %v95, 1.0
      %v104 = vmax.f32 %v80, 0.0
      %v105 = vmax.f32 %v81, 0.0
      %v106 = vmax.f32 %v82, 0.0
      %v107 = vmax.f32 %v83, 0.0
      %v108 = vmax.f32 %v84, 0.0
      %v109 = vmax.f32 %v85, 0.0
      %v110 = vmax.f32 %v86, 0.0
      %v111 = vmax.f32 %v87, 0.0
      %v112 = vmin.f32 %v104, 1.0
      %v113 = vmin.f32 %v105, 1.0
      %v114 = vmin.f32 %v106, 1.0
      %v115 = vmin.f32 %v107, 1.0
      %v116 = vmin.f32 %v108, 1.0
      %v117 = vmin.f32 %v109, 1.0
      %v118 = vmin.f32 %v110, 1.0
      %v119 = vmin.f32 %v111, 1.0
      %v120 = vsub.f32 %v96, %v112
      %v121 = vsub.f32 %v97, %v113
      %v122 = vsub.f32 %v98, %v114
      %v123 = vsub.f32 %v99, %v115
      %v124 = vsub.f32 %v100, %v116
      %v125 = vsub.f32 %v101, %v117
      %v126 = vsub.f32 %v102, %v118
      %v127 = vsub.f32 %v103, %v119
      %v128 = vmul.f32 %v120, %v120
      %v129 = vmul.f32 %v121, %v121
      %v130 = vmul.f32 %v122, %v122
      %v131 = vmul.f32 %v123, %v123
      %v132 = vmul.f32 %v124, %v124
      %v133 = vmul.f32 %v125, %v125
      %v134 = vmul.f32 %v126, %v126
      %v135 = vmul.f32 %v127, %v127
      %v136 = vadd.f32 %v128, %v129
      %v137 = vadd.f32 %v136, %v130
      %v138 = vadd.f32 %v137, %v131
      %v139 = vadd.f32 %v138, %v132
      %v140 = vadd.f32 %v139, %v133
      %v141 = vadd.f32 %v140, %v134
      %v142 = vadd.f32 %v141, %v135
      %v143 = vsub.f32 %v96, %v71
      %v144 = vsub.f32 %v97, %v72
      %v145 = vsub.f32 %v98, %v73
      %v146 = vsub.f32 %v99, %v74
      %v147 = vsub.f32 %v100, %v75
      %v148 = vsub.f32 %v101, %v76
      %v149 = vsub.f32 %v102, %v77
      %v150 = vsub.f32 %v103, %v78
      %v151 = vand.u32 2147483647, %v143
      %v152 = vand.u32 2147483647, %v144
      %v153 = vand.u32 2147483647, %v145
      %v154 = vand.u32 2147483647, %v146
      %v155 = vand.u32 2147483647, %v147
      %v156 = vand.u32 2147483647, %v148
      %v157 = vand.u32 2147483647, %v149
      %v158 = vand.u32 2147483647, %v150
      %v159 = vadd.f32 %v151, %v152
      %v160 = vadd.f32 %v159, %v153
      %v161 = vadd.f32 %v160, %v154
      %v162 = vadd.f32 %v161, %v155
      %v163 = vadd.f32 %v162, %v156
      %v164 = vadd.f32 %v163, %v157
      %v165 = vadd.f32 %v164, %v158
      %v166 = vadd.f32 %v67, %v142
      %v167 = vadd.f32 %v68, %v165
    $region26: #{tpu_custom_call.1} parent=1 // loop_footer
      %s66 = sadd.s32 1, %s62
    $region27: #{tpu_custom_call.1} parent=1 // loop_footer_branch
      %61 = sbr.rel target = $region23
    $region28: #{tpu_custom_call.1} parent=1 // loop_exit
      _
    %v168 = vld [vmem:[#allocation7] sm:$0xff]
    %v169 = vadd.f32 %v168, %v67
    %170 = vst [vmem:[#allocation7] sm:$0xff] %v169
    %v171 = vld [vmem:[#allocation8] sm:$0xff]
    %v172 = vadd.f32 %v171, %v68
    %173 = vst [vmem:[#allocation8] sm:$0xff] %v172
    // Predicated region
    $region29: #{tpu_custom_call.1} parent=1 // pred_check
      _
    $region30: #{tpu_custom_call.1} parent=1 // pred_check_branch
      %175 = sbr.rel (0) target = $region32
    $region31: #{tpu_custom_call.1} parent=1 // pred_region
      %s177 = ssub.s32 128, 128
      %178 = vsyncadd [#allocation4], %s177
      %s180 = sshll.u32 [#allocation7], 4
      %s181 = int_to_ptr.vmem [resolvable:$true] %s180
      %183 = dma.vmem_to_hbm [thread:$0]  %s181, 128, %s2, [#allocation4]
    $region32: #{tpu_custom_call.1} parent=1 // pred_fallthru
      _
    // Predicated region
    $region33: #{tpu_custom_call.1} parent=1 // pred_check
      _
    $region34: #{tpu_custom_call.1} parent=1 // pred_check_branch
      %185 = sbr.rel (0) target = $region36
    $region35: #{tpu_custom_call.1} parent=1 // pred_region
      %s187 = ssub.s32 128, 128
      %188 = vsyncadd [#allocation9], %s187
      %s190 = sshll.u32 [#allocation8], 4
      %s191 = int_to_ptr.vmem [resolvable:$true] %s190
      %193 = dma.vmem_to_hbm [thread:$0]  %s191, 128, %s3, [#allocation9]
    $region36: #{tpu_custom_call.1} parent=1 // pred_fallthru
      _
    // Predicated region
    $region37: #{tpu_custom_call.1} parent=1 // pred_check
      _
    $region38: #{tpu_custom_call.1} parent=1 // pred_check_branch
      %195 = sbr.rel (0) target = $region40
    $region39: #{tpu_custom_call.1} parent=1 // pred_region
      %196 = dma.done [#allocation4], 128
    $region40: #{tpu_custom_call.1} parent=1 // pred_fallthru
      _
    // Predicated region
    $region41: #{tpu_custom_call.1} parent=1 // pred_check
      _
    $region42: #{tpu_custom_call.1} parent=1 // pred_check_branch
      %198 = sbr.rel (0) target = $region44
    $region43: #{tpu_custom_call.1} parent=1 // pred_region
      %199 = dma.done [#allocation9], 128
    $region44: #{tpu_custom_call.1} parent=1 // pred_fallthru
      _
    %200 = vsyncpa [#allocation3], 1
    %201 = vsyncpa [#allocation6], 1
    %202 = vsyncpa [#allocation4], 1
    %203 = vsyncpa [#allocation9], 1

</llo_original>
